<compile_context>
chip_gen: v7x
topology: tpu7x:2x2x1
jax: 0.10.0
libtpu: 0.0.40
codegen_flags: <defaults>
</compile_context>

<pallas_src>
import functools

import jax
import jax.numpy as jnp
from jax import lax
from jax.experimental import pallas as pl
from jax.experimental.pallas import tpu as pltpu


def _upconv_kernel(x_ref, w_ref, b_ref, o_ref, *, Kw, p_orig, H, W, Cout, compute_dtype):
    """One grid step = one batch element, whole image.

    x_ref: (1, Cin, H*W)         flat channel-major image (spatial on the lane dim)
    w_ref: (Kw, Kw, 4*Cout, Cin) phase-folded weights, rows ordered (py, px, co)
    b_ref: (4*Cout, 1)           f32 bias, tiled over the 4 phases
    o_ref: (1, 4*Cout, H*W)      all 4 output phases, spatial on the lane dim
    """
    N = H * W
    x = x_ref[0]                                           # (Cin, N), input dtype (f32)

    # Flat output-pixel coordinate, hoisted once and shared by all tap masks.
    if Kw > 1:
        q = lax.broadcasted_iota(jnp.int32, (1, N), 1)
        if (W & (W - 1)) == 0:
            x_idx = q & (W - 1)                            # column index (W power of two)
        else:
            x_idx = q % W

    acc = jnp.zeros((4 * Cout, N), jnp.float32)
    for R in range(Kw):                                    # statically unrolled folded taps
        r_off = R - p_orig
        for C in range(Kw):
            c_off = C - p_orig
            # tap(q) = x[q + r_off*W + c_off]: one static lane roll of the flat image (XLU).
            shift = (-(r_off * W + c_off)) % N
            tap = x if shift == 0 else pltpu.roll(x, shift=shift, axis=1)

            # Zero contributions whose source pixel is outside the original image
            # (replaces the host-side jnp.pad of v2).  Row tests need no division:
            # y >= a  <=>  q >= a*W   and   y < b  <=>  q < b*W.
            conds = []
            if r_off < 0:
                conds.append(q >= (-r_off) * W)
            if r_off > 0:
                conds.append(q < (H - r_off) * W)
            if c_off < 0:
                conds.append(x_idx >= -c_off)
            if c_off > 0:
                conds.append(x_idx < W - c_off)
            if conds:
                valid = conds[0]
                for cnd in conds[1:]:
                    valid = valid & cnd
                tap = jnp.where(valid, tap, jnp.zeros_like(tap))

            # (4*Cout, Cin) x (Cin, N) -> (4*Cout, N), f32 MXU accumulation.
            acc = acc + jnp.dot(w_ref[R, C], tap.astype(compute_dtype),
                                preferred_element_type=jnp.float32)

    acc = acc + b_ref[...]                                 # f32 epilogue: bias add + cast
    o_ref[0] = acc.astype(o_ref.dtype)


def _fold_upsample_into_weights(weight, *, kernel_size):
    """Fold the nearest-2x upsample into the conv weights (subpixel decomposition).

    weight: (Cout, Cin, k, k) -> (Kw, Kw, Cin, 2, 2, Cout) folded taps at original
    resolution, plus p_orig (boundary extent) and Kw (folded window: 3 for k=3, 1 for k=1).
    """
    k = kernel_size
    pad = k // 2
    Cout, Cin = weight.shape[0], weight.shape[1]
    w_t = jnp.transpose(weight, (2, 3, 1, 0)).astype(jnp.float32)   # (k, k, Cin, Cout)

    # Original-resolution tap offset hit by (output phase p, kernel tap d).
    offs = [[(p + d - pad) // 2 for d in range(k)] for p in range(2)]
    omin = min(min(o) for o in offs)
    omax = max(max(o) for o in offs)
    p_orig = -omin
    Kw = omax - omin + 1

    w_fold = jnp.zeros((Kw, Kw, Cin, 2, 2, Cout), jnp.float32)
    for py in range(2):
        for px in range(2):
            for dy in range(k):
                for dx in range(k):
                    R = offs[py][dy] - omin
                    C = offs[px][dx] - omin
                    # taps aliasing the same original pixel are pre-summed here
                    w_fold = w_fold.at[R, C, :, py, px, :].add(w_t[dy, dx])
    return w_fold, p_orig, Kw


def upconv(x_nchw, weight, bias, *, kernel_size, compute_dtype=jnp.bfloat16):
    """Semantics of UpConv.forward: conv(interpolate(x, scale_factor=2, 'nearest')).

    x_nchw : (B, Cin, H, W)
    weight : (Cout, Cin, k, k)   (PyTorch Conv2d layout), k in {1, 3}
    bias   : (Cout,)
    returns: (B, Cout, 2H, 2W)
    """
    assert kernel_size in (1, 3)
    B, Cin, H, W = x_nchw.shape
    Cout = weight.shape[0]
    N = H * W

    # ---- fold the 2x nearest upsample into the weights -------------------------------
    w_fold, p_orig, Kw = _fold_upsample_into_weights(weight, kernel_size=kernel_size)
    # (Kw, Kw, Cin, 2, 2, Cout) -> (Kw, Kw, 4*Cout, Cin); row m = (2*py + px)*Cout + co.
    w_mat = jnp.transpose(w_fold, (0, 1, 3, 4, 5, 2)).reshape(Kw, Kw, 4 * Cout, Cin)
    w_mat = w_mat.astype(compute_dtype)
    b_mat = jnp.tile(bias.astype(jnp.float32), 4).reshape(4 * Cout, 1)

    # ---- input: free reshape only (channel-major kept, spatial flattened onto lanes) --
    x_flat = x_nchw.reshape(B, Cin, N)

    # Per-step VMEM footprint (incl. double buffering) must fit v7x's 64 MiB physical VMEM.
    # TODO(synk): for very large H*W, switch to halo-streamed row windows instead of
    # whole-image-per-step residency (and split rows when B == 1 so v7x megacore has >=2
    # parallel steps).
    def _ru(v, m):
        return ((v + m - 1) // m) * m
    itemsize = jnp.dtype(x_nchw.dtype).itemsize
    n_lanes = _ru(N, 128)
    vmem_est = (2 * _ru(Cin, 8) * n_lanes * itemsize            # input block, double-buffered
                + 2 * _ru(4 * Cout, 8) * n_lanes * itemsize     # output block, double-buffered
                + _ru(4 * Cout, 8) * n_lanes * 4                # f32 accumulator
                + 2 * Kw * Kw * _ru(4 * Cout, 8) * 128 * jnp.dtype(compute_dtype).itemsize)
    assert vmem_est < 40 * 2 ** 20, f"per-step VMEM estimate too large: {vmem_est} bytes"

    kernel = functools.partial(_upconv_kernel, Kw=Kw, p_orig=p_orig, H=H, W=W,
                               Cout=Cout, compute_dtype=compute_dtype)

    out = pl.pallas_call(
        kernel,
        out_shape=jax.ShapeDtypeStruct((B, 4 * Cout, N), x_nchw.dtype),
        grid_spec=pltpu.PrefetchScalarGridSpec(
            num_scalar_prefetch=0,
            grid=(B,),
            in_specs=[
                pl.BlockSpec((1, Cin, N), lambda b: (b, 0, 0)),
                pl.BlockSpec((Kw, Kw, 4 * Cout, Cin), lambda b: (0, 0, 0, 0)),
                pl.BlockSpec((4 * Cout, 1), lambda b: (0, 0)),
            ],
            out_specs=pl.BlockSpec((1, 4 * Cout, N), lambda b: (b, 0, 0)),
        ),
        compiler_params=pltpu.CompilerParams(
            dimension_semantics=("parallel",),        # B independent steps -> v7x megacore
            vmem_limit_bytes=48 * 1024 * 1024,        # <= v7x 64 MiB physical
        ),
    )(x_flat, w_mat, b_mat)

    # Untangle phases: (b, py, px, co, y, x) -> (B, Cout, 2H, 2W).  Single fused XLA
    # transpose (an output transpose is required for the NCHW API anyway).
    out6 = out.reshape(B, 2, 2, Cout, H, W)
    return jnp.transpose(out6, (0, 3, 4, 1, 5, 2)).reshape(B, Cout, 2 * H, 2 * W)


upconv_jit = jax.jit(upconv, static_argnames=("kernel_size", "compute_dtype"))


def _reference_upconv(x_nchw, weight, bias, *, kernel_size):
    """Pure-JAX reference (lax conv on the nearest-upsampled input)."""
    pad = kernel_size // 2
    xu = jnp.repeat(jnp.repeat(x_nchw, 2, axis=2), 2, axis=3)
    out = lax.conv_general_dilated(
        xu, weight,
        window_strides=(1, 1),
        padding=((pad, pad), (pad, pad)),
        dimension_numbers=("NCHW", "OIHW", "NCHW"),
    )
    return out + bias.reshape(1, -1, 1, 1)


if __name__ == "__main__":
    # Module config: UpConv(in_channels=4, out_channels=8, kernel_size=3, bias=True)
    B, Cin, H, W = 2, 4, 16, 16
    Cout, K = 8, 3

    key = jax.random.PRNGKey(0)
    kx, kw, kb, kw1, kb1 = jax.random.split(key, 5)
    x = jax.random.normal(kx, (B, Cin, H, W), dtype=jnp.float32)
    weight = jax.random.normal(kw, (Cout, Cin, K, K), dtype=jnp.float32) * 0.1
    bias = jax.random.normal(kb, (Cout,), dtype=jnp.float32) * 0.1

    ref = _reference_upconv(x, weight, bias, kernel_size=K)

    # Performance path: bf16 MXU inputs, f32 accumulation/epilogue.
    out = jax.block_until_ready(upconv_jit(x, weight, bias, kernel_size=K))
    assert out.shape == (B, Cout, 2 * H, 2 * W), out.shape
    assert jnp.allclose(out, ref, atol=5e-2, rtol=5e-2), float(jnp.max(jnp.abs(out - ref)))

    # f32 path: tight check of the subpixel folding / roll+mask indexing.
    out32 = jax.block_until_ready(
        upconv_jit(x, weight, bias, kernel_size=K, compute_dtype=jnp.float32))
    assert jnp.allclose(out32, ref, atol=1e-4, rtol=1e-4), float(jnp.max(jnp.abs(out32 - ref)))

    # kernel_size=1 branch of the module.
    w1 = jax.random.normal(kw1, (Cout, Cin, 1, 1), dtype=jnp.float32) * 0.1
    b1 = jax.random.normal(kb1, (Cout,), dtype=jnp.float32) * 0.1
    out1 = jax.block_until_ready(
        upconv_jit(x, w1, b1, kernel_size=1, compute_dtype=jnp.float32))
    ref1 = _reference_upconv(x, w1, b1, kernel_size=1)
    assert jnp.allclose(out1, ref1, atol=1e-4, rtol=1e-4), float(jnp.max(jnp.abs(out1 - ref1)))

    print("KERNEL_OK")
</pallas_src>

<mosaic_0001>
module attributes {stable_mosaic.version = 11 : i64} {
  func.func @_upconv_kernel(%arg0: i32, %arg1: memref<1x4x256xf32, #tpu.memory_space<vmem>>, %arg2: memref<3x3x32x4xbf16, #tpu.memory_space<vmem>>, %arg3: memref<32x1xf32, #tpu.memory_space<vmem>>, %arg4: memref<1x32x256xf32, #tpu.memory_space<vmem>>) attributes {dimension_semantics = [#tpu.dimension_semantics<parallel>], iteration_bounds = array<i64: 2>, scalar_prefetch = 0 : i64, scratch_operands = 0 : i64, tpu.core_type = #tpu.core_type<tc>, window_params = [{transform_indices = @transform_0, window_bounds = array<i64: 1, 4, 256>}, {pipeline_mode = #tpu.pipeline_mode<synchronous>, transform_indices = @transform_1, window_bounds = array<i64: 3, 3, 32, 4>}, {pipeline_mode = #tpu.pipeline_mode<synchronous>, transform_indices = @transform_2, window_bounds = array<i64: 32, 1>}, {transform_indices = @transform_3, window_bounds = array<i64: 1, 32, 256>}]} {
    %c0 = arith.constant 0 : index
    %c0_0 = arith.constant 0 : index
    %c0_1 = arith.constant 0 : index
    %0 = vector.load %arg1[%c0, %c0_0, %c0_1] : memref<1x4x256xf32, #tpu.memory_space<vmem>>, vector<1x4x256xf32>
    %1 = vector.shape_cast %0 : vector<1x4x256xf32> to vector<4x256xf32>
    %2 = tpu.iota {dimensions = array<i32: 1>} : vector<1x256xi32>
    %c15_i32 = arith.constant 15 : i32
    %3 = vector.broadcast %c15_i32 : i32 to vector<1x256xi32>
    %4 = arith.andi %2, %3 : vector<1x256xi32>
    %cst = arith.constant 0.000000e+00 : f32
    %5 = vector.broadcast %cst : f32 to vector<32x256xf32>
    %c17_i32 = arith.constant 17 : i32
    %6 = tpu.dynamic_rotate %1 by %c17_i32 dim 1 : vector<4x256xf32>, i32 -> vector<4x256xf32>
    %c16_i32 = arith.constant 16 : i32
    %7 = vector.broadcast %c16_i32 : i32 to vector<1x256xi32>
    %8 = arith.cmpi sge, %2, %7 : vector<1x256xi32>
    %c1_i32 = arith.constant 1 : i32
    %9 = vector.broadcast %c1_i32 : i32 to vector<1x256xi32>
    %10 = arith.cmpi sge, %4, %9 : vector<1x256xi32>
    %11 = arith.andi %8, %10 : vector<1x256xi1>
    %cst_2 = arith.constant 0.000000e+00 : f32
    %12 = vector.broadcast %cst_2 : f32 to vector<4x256xf32>
    %13 = vector.shape_cast %11 : vector<1x256xi1> to vector<1x256xi1>
    %14 = vector.broadcast %13 : vector<1x256xi1> to vector<4x256xi1>
    %15 = arith.select %14, %6, %12 : vector<4x256xi1>, vector<4x256xf32>
    %c0_3 = arith.constant 0 : index
    %c0_4 = arith.constant 0 : index
    %c0_5 = arith.constant 0 : index
    %c0_6 = arith.constant 0 : index
    %16 = vector.load %arg2[%c0_3, %c0_4, %c0_5, %c0_6] : memref<3x3x32x4xbf16, #tpu.memory_space<vmem>>, vector<1x1x32x4xbf16>
    %17 = vector.shape_cast %16 : vector<1x1x32x4xbf16> to vector<32x4xbf16>
    %18 = arith.truncf %15 : vector<4x256xf32> to vector<4x256xbf16>
    %cst_7 = arith.constant dense<0.000000e+00> : vector<32x256xf32>
    %19 = tpu.matmul %17, %18, %cst_7 {dimension_numbers = #tpu.dot_dimension_numbers<[1], [0], [0], [1], [0, 0, 1, 1], [], []>} : vector<32x4xbf16>, vector<4x256xbf16>, vector<32x256xf32> -> vector<32x256xf32>
    %20 = arith.addf %5, %19 : vector<32x256xf32>
    %c16_i32_8 = arith.constant 16 : i32
    %21 = tpu.dynamic_rotate %1 by %c16_i32_8 dim 1 : vector<4x256xf32>, i32 -> vector<4x256xf32>
    %c16_i32_9 = arith.constant 16 : i32
    %22 = vector.broadcast %c16_i32_9 : i32 to vector<1x256xi32>
    %23 = arith.cmpi sge, %2, %22 : vector<1x256xi32>
    %cst_10 = arith.constant 0.000000e+00 : f32
    %24 = vector.broadcast %cst_10 : f32 to vector<4x256xf32>
    %25 = vector.shape_cast %23 : vector<1x256xi1> to vector<1x256xi1>
    %26 = vector.broadcast %25 : vector<1x256xi1> to vector<4x256xi1>
    %27 = arith.select %26, %21, %24 : vector<4x256xi1>, vector<4x256xf32>
    %c0_11 = arith.constant 0 : index
    %c1 = arith.constant 1 : index
    %c0_12 = arith.constant 0 : index
    %c0_13 = arith.constant 0 : index
    %28 = vector.load %arg2[%c0_11, %c1, %c0_12, %c0_13] : memref<3x3x32x4xbf16, #tpu.memory_space<vmem>>, vector<1x1x32x4xbf16>
    %29 = vector.shape_cast %28 : vector<1x1x32x4xbf16> to vector<32x4xbf16>
    %30 = arith.truncf %27 : vector<4x256xf32> to vector<4x256xbf16>
    %cst_14 = arith.constant dense<0.000000e+00> : vector<32x256xf32>
    %31 = tpu.matmul %29, %30, %cst_14 {dimension_numbers = #tpu.dot_dimension_numbers<[1], [0], [0], [1], [0, 0, 1, 1], [], []>} : vector<32x4xbf16>, vector<4x256xbf16>, vector<32x256xf32> -> vector<32x256xf32>
    %32 = arith.addf %20, %31 : vector<32x256xf32>
    %c15_i32_15 = arith.constant 15 : i32
    %33 = tpu.dynamic_rotate %1 by %c15_i32_15 dim 1 : vector<4x256xf32>, i32 -> vector<4x256xf32>
    %c16_i32_16 = arith.constant 16 : i32
    %34 = vector.broadcast %c16_i32_16 : i32 to vector<1x256xi32>
    %35 = arith.cmpi sge, %2, %34 : vector<1x256xi32>
    %c15_i32_17 = arith.constant 15 : i32
    %36 = vector.broadcast %c15_i32_17 : i32 to vector<1x256xi32>
    %37 = arith.cmpi slt, %4, %36 : vector<1x256xi32>
    %38 = arith.andi %35, %37 : vector<1x256xi1>
    %cst_18 = arith.constant 0.000000e+00 : f32
    %39 = vector.broadcast %cst_18 : f32 to vector<4x256xf32>
    %40 = vector.shape_cast %38 : vector<1x256xi1> to vector<1x256xi1>
    %41 = vector.broadcast %40 : vector<1x256xi1> to vector<4x256xi1>
    %42 = arith.select %41, %33, %39 : vector<4x256xi1>, vector<4x256xf32>
    %c0_19 = arith.constant 0 : index
    %c2 = arith.constant 2 : index
    %c0_20 = arith.constant 0 : index
    %c0_21 = arith.constant 0 : index
    %43 = vector.load %arg2[%c0_19, %c2, %c0_20, %c0_21] : memref<3x3x32x4xbf16, #tpu.memory_space<vmem>>, vector<1x1x32x4xbf16>
    %44 = vector.shape_cast %43 : vector<1x1x32x4xbf16> to vector<32x4xbf16>
    %45 = arith.truncf %42 : vector<4x256xf32> to vector<4x256xbf16>
    %cst_22 = arith.constant dense<0.000000e+00> : vector<32x256xf32>
    %46 = tpu.matmul %44, %45, %cst_22 {dimension_numbers = #tpu.dot_dimension_numbers<[1], [0], [0], [1], [0, 0, 1, 1], [], []>} : vector<32x4xbf16>, vector<4x256xbf16>, vector<32x256xf32> -> vector<32x256xf32>
    %47 = arith.addf %32, %46 : vector<32x256xf32>
    %c1_i32_23 = arith.constant 1 : i32
    %48 = tpu.dynamic_rotate %1 by %c1_i32_23 dim 1 : vector<4x256xf32>, i32 -> vector<4x256xf32>
    %c1_i32_24 = arith.constant 1 : i32
    %49 = vector.broadcast %c1_i32_24 : i32 to vector<1x256xi32>
    %50 = arith.cmpi sge, %4, %49 : vector<1x256xi32>
    %cst_25 = arith.constant 0.000000e+00 : f32
    %51 = vector.broadcast %cst_25 : f32 to vector<4x256xf32>
    %52 = vector.shape_cast %50 : vector<1x256xi1> to vector<1x256xi1>
    %53 = vector.broadcast %52 : vector<1x256xi1> to vector<4x256xi1>
    %54 = arith.select %53, %48, %51 : vector<4x256xi1>, vector<4x256xf32>
    %c1_26 = arith.constant 1 : index
    %c0_27 = arith.constant 0 : index
    %c0_28 = arith.constant 0 : index
    %c0_29 = arith.constant 0 : index
    %55 = vector.load %arg2[%c1_26, %c0_27, %c0_28, %c0_29] : memref<3x3x32x4xbf16, #tpu.memory_space<vmem>>, vector<1x1x32x4xbf16>
    %56 = vector.shape_cast %55 : vector<1x1x32x4xbf16> to vector<32x4xbf16>
    %57 = arith.truncf %54 : vector<4x256xf32> to vector<4x256xbf16>
    %cst_30 = arith.constant dense<0.000000e+00> : vector<32x256xf32>
    %58 = tpu.matmul %56, %57, %cst_30 {dimension_numbers = #tpu.dot_dimension_numbers<[1], [0], [0], [1], [0, 0, 1, 1], [], []>} : vector<32x4xbf16>, vector<4x256xbf16>, vector<32x256xf32> -> vector<32x256xf32>
    %59 = arith.addf %47, %58 : vector<32x256xf32>
    %c1_31 = arith.constant 1 : index
    %c1_32 = arith.constant 1 : index
    %c0_33 = arith.constant 0 : index
    %c0_34 = arith.constant 0 : index
    %60 = vector.load %arg2[%c1_31, %c1_32, %c0_33, %c0_34] : memref<3x3x32x4xbf16, #tpu.memory_space<vmem>>, vector<1x1x32x4xbf16>
    %61 = vector.shape_cast %60 : vector<1x1x32x4xbf16> to vector<32x4xbf16>
    %62 = arith.truncf %1 : vector<4x256xf32> to vector<4x256xbf16>
    %cst_35 = arith.constant dense<0.000000e+00> : vector<32x256xf32>
    %63 = tpu.matmul %61, %62, %cst_35 {dimension_numbers = #tpu.dot_dimension_numbers<[1], [0], [0], [1], [0, 0, 1, 1], [], []>} : vector<32x4xbf16>, vector<4x256xbf16>, vector<32x256xf32> -> vector<32x256xf32>
    %64 = arith.addf %59, %63 : vector<32x256xf32>
    %c255_i32 = arith.constant 255 : i32
    %65 = tpu.dynamic_rotate %1 by %c255_i32 dim 1 : vector<4x256xf32>, i32 -> vector<4x256xf32>
    %c15_i32_36 = arith.constant 15 : i32
    %66 = vector.broadcast %c15_i32_36 : i32 to vector<1x256xi32>
    %67 = arith.cmpi slt, %4, %66 : vector<1x256xi32>
    %cst_37 = arith.constant 0.000000e+00 : f32
    %68 = vector.broadcast %cst_37 : f32 to vector<4x256xf32>
    %69 = vector.shape_cast %67 : vector<1x256xi1> to vector<1x256xi1>
    %70 = vector.broadcast %69 : vector<1x256xi1> to vector<4x256xi1>
    %71 = arith.select %70, %65, %68 : vector<4x256xi1>, vector<4x256xf32>
    %c1_38 = arith.constant 1 : index
    %c2_39 = arith.constant 2 : index
    %c0_40 = arith.constant 0 : index
    %c0_41 = arith.constant 0 : index
    %72 = vector.load %arg2[%c1_38, %c2_39, %c0_40, %c0_41] : memref<3x3x32x4xbf16, #tpu.memory_space<vmem>>, vector<1x1x32x4xbf16>
    %73 = vector.shape_cast %72 : vector<1x1x32x4xbf16> to vector<32x4xbf16>
    %74 = arith.truncf %71 : vector<4x256xf32> to vector<4x256xbf16>
    %cst_42 = arith.constant dense<0.000000e+00> : vector<32x256xf32>
    %75 = tpu.matmul %73, %74, %cst_42 {dimension_numbers = #tpu.dot_dimension_numbers<[1], [0], [0], [1], [0, 0, 1, 1], [], []>} : vector<32x4xbf16>, vector<4x256xbf16>, vector<32x256xf32> -> vector<32x256xf32>
    %76 = arith.addf %64, %75 : vector<32x256xf32>
    %c241_i32 = arith.constant 241 : i32
    %77 = tpu.dynamic_rotate %1 by %c241_i32 dim 1 : vector<4x256xf32>, i32 -> vector<4x256xf32>
    %c240_i32 = arith.constant 240 : i32
    %78 = vector.broadcast %c240_i32 : i32 to vector<1x256xi32>
    %79 = arith.cmpi slt, %2, %78 : vector<1x256xi32>
    %c1_i32_43 = arith.constant 1 : i32
    %80 = vector.broadcast %c1_i32_43 : i32 to vector<1x256xi32>
    %81 = arith.cmpi sge, %4, %80 : vector<1x256xi32>
    %82 = arith.andi %79, %81 : vector<1x256xi1>
    %cst_44 = arith.constant 0.000000e+00 : f32
    %83 = vector.broadcast %cst_44 : f32 to vector<4x256xf32>
    %84 = vector.shape_cast %82 : vector<1x256xi1> to vector<1x256xi1>
    %85 = vector.broadcast %84 : vector<1x256xi1> to vector<4x256xi1>
    %86 = arith.select %85, %77, %83 : vector<4x256xi1>, vector<4x256xf32>
    %c2_45 = arith.constant 2 : index
    %c0_46 = arith.constant 0 : index
    %c0_47 = arith.constant 0 : index
    %c0_48 = arith.constant 0 : index
    %87 = vector.load %arg2[%c2_45, %c0_46, %c0_47, %c0_48] : memref<3x3x32x4xbf16, #tpu.memory_space<vmem>>, vector<1x1x32x4xbf16>
    %88 = vector.shape_cast %87 : vector<1x1x32x4xbf16> to vector<32x4xbf16>
    %89 = arith.truncf %86 : vector<4x256xf32> to vector<4x256xbf16>
    %cst_49 = arith.constant dense<0.000000e+00> : vector<32x256xf32>
    %90 = tpu.matmul %88, %89, %cst_49 {dimension_numbers = #tpu.dot_dimension_numbers<[1], [0], [0], [1], [0, 0, 1, 1], [], []>} : vector<32x4xbf16>, vector<4x256xbf16>, vector<32x256xf32> -> vector<32x256xf32>
    %91 = arith.addf %76, %90 : vector<32x256xf32>
    %c240_i32_50 = arith.constant 240 : i32
    %92 = tpu.dynamic_rotate %1 by %c240_i32_50 dim 1 : vector<4x256xf32>, i32 -> vector<4x256xf32>
    %c240_i32_51 = arith.constant 240 : i32
    %93 = vector.broadcast %c240_i32_51 : i32 to vector<1x256xi32>
    %94 = arith.cmpi slt, %2, %93 : vector<1x256xi32>
    %cst_52 = arith.constant 0.000000e+00 : f32
    %95 = vector.broadcast %cst_52 : f32 to vector<4x256xf32>
    %96 = vector.shape_cast %94 : vector<1x256xi1> to vector<1x256xi1>
    %97 = vector.broadcast %96 : vector<1x256xi1> to vector<4x256xi1>
    %98 = arith.select %97, %92, %95 : vector<4x256xi1>, vector<4x256xf32>
    %c2_53 = arith.constant 2 : index
    %c1_54 = arith.constant 1 : index
    %c0_55 = arith.constant 0 : index
    %c0_56 = arith.constant 0 : index
    %99 = vector.load %arg2[%c2_53, %c1_54, %c0_55, %c0_56] : memref<3x3x32x4xbf16, #tpu.memory_space<vmem>>, vector<1x1x32x4xbf16>
    %100 = vector.shape_cast %99 : vector<1x1x32x4xbf16> to vector<32x4xbf16>
    %101 = arith.truncf %98 : vector<4x256xf32> to vector<4x256xbf16>
    %cst_57 = arith.constant dense<0.000000e+00> : vector<32x256xf32>
    %102 = tpu.matmul %100, %101, %cst_57 {dimension_numbers = #tpu.dot_dimension_numbers<[1], [0], [0], [1], [0, 0, 1, 1], [], []>} : vector<32x4xbf16>, vector<4x256xbf16>, vector<32x256xf32> -> vector<32x256xf32>
    %103 = arith.addf %91, %102 : vector<32x256xf32>
    %c239_i32 = arith.constant 239 : i32
    %104 = tpu.dynamic_rotate %1 by %c239_i32 dim 1 : vector<4x256xf32>, i32 -> vector<4x256xf32>
    %c240_i32_58 = arith.constant 240 : i32
    %105 = vector.broadcast %c240_i32_58 : i32 to vector<1x256xi32>
    %106 = arith.cmpi slt, %2, %105 : vector<1x256xi32>
    %c15_i32_59 = arith.constant 15 : i32
    %107 = vector.broadcast %c15_i32_59 : i32 to vector<1x256xi32>
    %108 = arith.cmpi slt, %4, %107 : vector<1x256xi32>
    %109 = arith.andi %106, %108 : vector<1x256xi1>
    %cst_60 = arith.constant 0.000000e+00 : f32
    %110 = vector.broadcast %cst_60 : f32 to vector<4x256xf32>
    %111 = vector.shape_cast %109 : vector<1x256xi1> to vector<1x256xi1>
    %112 = vector.broadcast %111 : vector<1x256xi1> to vector<4x256xi1>
    %113 = arith.select %112, %104, %110 : vector<4x256xi1>, vector<4x256xf32>
    %c2_61 = arith.constant 2 : index
    %c2_62 = arith.constant 2 : index
    %c0_63 = arith.constant 0 : index
    %c0_64 = arith.constant 0 : index
    %114 = vector.load %arg2[%c2_61, %c2_62, %c0_63, %c0_64] : memref<3x3x32x4xbf16, #tpu.memory_space<vmem>>, vector<1x1x32x4xbf16>
    %115 = vector.shape_cast %114 : vector<1x1x32x4xbf16> to vector<32x4xbf16>
    %116 = arith.truncf %113 : vector<4x256xf32> to vector<4x256xbf16>
    %cst_65 = arith.constant dense<0.000000e+00> : vector<32x256xf32>
    %117 = tpu.matmul %115, %116, %cst_65 {dimension_numbers = #tpu.dot_dimension_numbers<[1], [0], [0], [1], [0, 0, 1, 1], [], []>} : vector<32x4xbf16>, vector<4x256xbf16>, vector<32x256xf32> -> vector<32x256xf32>
    %118 = arith.addf %103, %117 : vector<32x256xf32>
    %c0_66 = arith.constant 0 : index
    %c0_67 = arith.constant 0 : index
    %119 = vector.load %arg3[%c0_66, %c0_67] : memref<32x1xf32, #tpu.memory_space<vmem>>, vector<32x1xf32>
    %120 = vector.broadcast %119 : vector<32x1xf32> to vector<32x256xf32>
    %121 = arith.addf %118, %120 : vector<32x256xf32>
    %c0_68 = arith.constant 0 : index
    %c0_69 = arith.constant 0 : index
    %c0_70 = arith.constant 0 : index
    %122 = vector.load %arg4[%c0_68, %c0_69, %c0_70] : memref<1x32x256xf32, #tpu.memory_space<vmem>>, vector<1x32x256xf32>
    %123 = vector.shape_cast %122 : vector<1x32x256xf32> to vector<32x256xf32>
    %124 = vector.shape_cast %121 : vector<32x256xf32> to vector<1x32x256xf32>
    tpu.vector_store %arg4[%c0_68, %c0_69, %c0_70], %124 {strides = array<i32>} : memref<1x32x256xf32, #tpu.memory_space<vmem>>, vector<1x32x256xf32>,
    return
  }
  func.func @transform_0(%arg0: i32) -> (i32, i32, i32) {
    %c0_i32 = arith.constant 0 : i32
    %c0_i32_0 = arith.constant 0 : i32
    %c0_i32_1 = arith.constant 0 : i32
    return %arg0, %c0_i32, %c0_i32_0 : i32, i32, i32
  }
  func.func @transform_1(%arg0: i32) -> (i32, i32, i32, i32) {
    %c0_i32 = arith.constant 0 : i32
    %c0_i32_0 = arith.constant 0 : i32
    %c0_i32_1 = arith.constant 0 : i32
    %c0_i32_2 = arith.constant 0 : i32
    %c0_i32_3 = arith.constant 0 : i32
    return %c0_i32, %c0_i32_0, %c0_i32_1, %c0_i32_2 : i32, i32, i32, i32
  }
  func.func @transform_2(%arg0: i32) -> (i32, i32) {
    %c0_i32 = arith.constant 0 : i32
    %c0_i32_0 = arith.constant 0 : i32
    %c0_i32_1 = arith.constant 0 : i32
    return %c0_i32, %c0_i32_0 : i32, i32
  }
  func.func @transform_3(%arg0: i32) -> (i32, i32, i32) {
    %c0_i32 = arith.constant 0 : i32
    %c0_i32_0 = arith.constant 0 : i32
    %c0_i32_1 = arith.constant 0 : i32
    return %arg0, %c0_i32, %c0_i32_0 : i32, i32, i32
  }
}

</mosaic_0001>

<llo_original>
// kernel: tile.0
$region0: #{tile.0}
  %s0 = inlined_call_operand.vmem [shape: f32[4,8], index: 0, kind: input, shape index: {}]
  %s1 = inlined_call_operand.vmem [shape: f32[32,1], index: 1, kind: output, shape index: {}]
  $region1: #{tile.0} parent=0
    #allocation0 [shape = 'u8[4096]{0}', space=vmem, size = 0x1000, scoped, tag = 'scoped mem for input reshape']
    %s3 = sshllo.u32 0, 4
    %v4 = vld [vmem:[%s0] sm:%s3]
    %5 = vst [vmem:[#allocation0] sm:%s3] %v4
    %v6 = vld [vmem:[#allocation0] sm:$0xf]
    %vm7 = vcmask 7168
    %8 = vst.msk [vmem:[%s1] ss:$8 sm:$0xf] %vm7, %v6
    %v9 = vld [vmem:[#allocation0] sm:$0xf]
    %10 = vrot.lane.b32.xlu0 %v9, 127
    %v11 = vpop.permute.xlu0 %10
    %vm12 = vcmask 7168
    %s13 = scalar_lea.vmem %s1, 1
    %14 = vst.msk [vmem:[%s13] ss:$8 sm:$0xf] %vm12, %v11
    %v15 = vld [vmem:[#allocation0] sm:$0xf]
    %16 = vrot.lane.b32.xlu0 %v15, 126
    %v17 = vpop.permute.xlu0 %16
    %vm18 = vcmask 7168
    %s19 = scalar_lea.vmem %s1, 2
    %20 = vst.msk [vmem:[%s19] ss:$8 sm:$0xf] %vm18, %v17
    %v21 = vld [vmem:[#allocation0] sm:$0xf]
    %22 = vrot.lane.b32.xlu0 %v21, 125
    %v23 = vpop.permute.xlu0 %22
    %vm24 = vcmask 7168
    %s25 = scalar_lea.vmem %s1, 3
    %26 = vst.msk [vmem:[%s25] ss:$8 sm:$0xf] %vm24, %v23
    %v27 = vld [vmem:[#allocation0] sm:$0xf]
    %28 = vrot.lane.b32.xlu0 %v27, 124
    %v29 = vpop.permute.xlu0 %28
    %vm30 = vcmask 7168
    %s31 = scalar_lea.vmem %s1, 4
    %32 = vst.msk [vmem:[%s31] ss:$8 sm:$0xf] %vm30, %v29
    %v33 = vld [vmem:[#allocation0] sm:$0xf]
    %34 = vrot.lane.b32.xlu0 %v33, 123
    %v35 = vpop.permute.xlu0 %34
    %vm36 = vcmask 7168
    %s37 = scalar_lea.vmem %s1, 5
    %38 = vst.msk [vmem:[%s37] ss:$8 sm:$0xf] %vm36, %v35
    %v39 = vld [vmem:[#allocation0] sm:$0xf]
    %40 = vrot.lane.b32.xlu0 %v39, 122
    %v41 = vpop.permute.xlu0 %40
    %vm42 = vcmask 7168
    %s43 = scalar_lea.vmem %s1, 6
    %44 = vst.msk [vmem:[%s43] ss:$8 sm:$0xf] %vm42, %v41
    %v45 = vld [vmem:[#allocation0] sm:$0xf]
    %46 = vrot.lane.b32.xlu0 %v45, 121
    %v47 = vpop.permute.xlu0 %46
    %vm48 = vcmask 7168
    %s49 = scalar_lea.vmem %s1, 7
    %50 = vst.msk [vmem:[%s49] ss:$8 sm:$0xf] %vm48, %v47

// kernel: tile.8
$region0: #{tile.8}
  #allocation0 [shape = 's32[1]{0}', space=sflag, size = 0x4, scoped, tag = 'scoped memory for tile.8']
  %s0 = inlined_call_operand.vmem [shape: f32[8], index: 0, kind: input, shape index: {}]
  %s1 = inlined_call_operand.vmem [shape: f32[4,8], index: 1, kind: output, shape index: {}]
  // Predicated region
  $region2: #{tile.8} parent=0 // pred_check
    _
  $region3: #{tile.8} parent=0 // pred_check_branch
    %3 = sbr.rel (0) target = $region5
  $region4: #{tile.8} parent=0 // pred_region
    _
  $region5: #{tile.8} parent=0 // pred_fallthru
    _
  %v4 = vld [vmem:[%s0] ss:$0 sm:$0xff]
  %5 = vst [vmem:[%s1] sm:$0xf] %v4

// kernel: upconv.1
$region0: #{upconv.1}
  #allocation0 [shape = 'u32[]', space=smem, size = 0x4, offset = 0x4, fixed_abs, tag = 'smem constant byte address 0x4 - core index']
  #allocation1 [shape = 'u32[144,128]{1,0:T(1,128)}', space=vmem, size = 0x12000, scoped, tag = 'internal scratch']
  %s0 = inlined_call_operand.vmem [shape: f32[2,4,256], index: 0, kind: input, shape index: {}]
  %s1 = inlined_call_operand.vmem [shape: bf16[3,3,32,4], index: 1, kind: input, shape index: {}]
  %s2 = inlined_call_operand.vmem [shape: f32[32,1], index: 2, kind: input, shape index: {}]
  %s3 = inlined_call_operand.vmem [shape: f32[2,32,256], index: 3, kind: output, shape index: {}]
  %s4 = sld [smem:[#allocation0]]
  $region45: #{upconv.1} parent=0
    _
  %s6 = ssub.s32 1, %s4
  %s7 = scalar_select 0, %s6, %s4
  loop: start=0, step=1, limit=4
  $region2: #{upconv.1} parent=0 // loop_pre_header
    _
  $region3: #{upconv.1} parent=0 // loop_header
    %s9 = sphi 0, %s13
    %p10 = scmp.ge.s32.totalorder %s9, 4
    %s19 = sphi 0, %s21
    %s22 = sphi 0, %s19
    %s23 = sphi 0, %s22
    %s39 = sphi 0, %s23
    %s43 = sphi 0, %s43
    %s45 = sphi 0, %s43
    %s46 = sphi 0, %s45
    %s60 = sphi 0, %s46
    %s64 = sphi 0, %s64
    %s66 = sphi 0, %s64
    %s67 = sphi 0, %s66
    %s81 = sphi 0, %s67
    %s87 = sphi 0, %s89
    %s90 = sphi 0, %s87
    %s91 = sphi 0, %s90
    %s107 = sphi 0, %s91
  $region4: #{upconv.1} parent=0 // loop_header_branch
    %12 = sbr.rel (%p10) target = $region8
  $region5: #{upconv.1} parent=0 // loop_body
    %s14 = ssub.s32 %s9, 1
    %s15 = ssub.s32 %s9, 2
    %s16 = sadd.s32 %s9, 1
    %s17 = ssub.s32 %s9, %s16
    %p18 = scmp.eq.s32.totalorder %s17, 0
    %s20 = sadd.s32 %s19, 1
    %s21 = scalar_select %p18, %s19, %s20
    %p24 = pneg %p18
    %p25 = scmp.eq.s32.totalorder %s9, 1
    %p26 = por %p24, %p25
    %p27 = scmp.ne.s32.totalorder %s19, %s22
    %p28 = scmp.eq.s32.totalorder %s9, 0
    %p29 = por %p27, %p28
    %p30 = scmp.ne.s32.totalorder %s19, %s22
    %p31 = scmp.eq.s32.totalorder %s14, 1
    %p32 = por %p30, %p31
    %p33 = scmp.ne.s32.totalorder %s22, %s23
    %p34 = scmp.eq.s32.totalorder %s14, 0
    %p35 = por %p33, %p34
    %p36 = scmp.ne.s32.totalorder %s22, %s23
    %p37 = scmp.eq.s32.totalorder %s15, 1
    %p38 = por %p36, %p37
    %p40 = scmp.ne.s32.totalorder %s23, %s39
    %p41 = scmp.eq.s32.totalorder %s15, 0
    %p42 = por %p40, %p41
    %s44 = sadd.s32 %s43, 1
    %p47 = scmp.eq.s32.totalorder %s9, 1
    %p48 = scmp.ne.s32.totalorder %s43, %s45
    %p49 = scmp.eq.s32.totalorder %s9, 0
    %p50 = por %p48, %p49
    %p51 = scmp.ne.s32.totalorder %s43, %s45
    %p52 = scmp.eq.s32.totalorder %s14, 1
    %p53 = por %p51, %p52
    %p54 = scmp.ne.s32.totalorder %s45, %s46
    %p55 = scmp.eq.s32.totalorder %s14, 0
    %p56 = por %p54, %p55
    %p57 = scmp.ne.s32.totalorder %s45, %s46
    %p58 = scmp.eq.s32.totalorder %s15, 1
    %p59 = por %p57, %p58
    %p61 = scmp.ne.s32.totalorder %s46, %s60
    %p62 = scmp.eq.s32.totalorder %s15, 0
    %p63 = por %p61, %p62
    %s65 = sadd.s32 %s64, 1
    %p68 = scmp.eq.s32.totalorder %s9, 1
    %p69 = scmp.ne.s32.totalorder %s64, %s66
    %p70 = scmp.eq.s32.totalorder %s9, 0
    %p71 = por %p69, %p70
    %p72 = scmp.ne.s32.totalorder %s64, %s66
    %p73 = scmp.eq.s32.totalorder %s14, 1
    %p74 = por %p72, %p73
    %p75 = scmp.ne.s32.totalorder %s66, %s67
    %p76 = scmp.eq.s32.totalorder %s14, 0
    %p77 = por %p75, %p76
    %p78 = scmp.ne.s32.totalorder %s66, %s67
    %p79 = scmp.eq.s32.totalorder %s15, 1
    %p80 = por %p78, %p79
    %p82 = scmp.ne.s32.totalorder %s67, %s81
    %p83 = scmp.eq.s32.totalorder %s15, 0
    %p84 = por %p82, %p83
    %s85 = ssub.s32 %s9, %s16
    %p86 = scmp.eq.s32.totalorder %s85, 0
    %s88 = sadd.s32 %s87, 1
    %s89 = scalar_select %p86, %s87, %s88
    %p92 = pneg %p86
    %p93 = scmp.eq.s32.totalorder %s9, 1
    %p94 = por %p92, %p93
    %p95 = scmp.ne.s32.totalorder %s87, %s90
    %p96 = scmp.eq.s32.totalorder %s9, 0
    %p97 = por %p95, %p96
    %p98 = scmp.ne.s32.totalorder %s87, %s90
    %p99 = scmp.eq.s32.totalorder %s14, 1
    %p100 = por %p98, %p99
    %p101 = scmp.ne.s32.totalorder %s90, %s91
    %p102 = scmp.eq.s32.totalorder %s14, 0
    %p103 = por %p101, %p102
    %p104 = scmp.ne.s32.totalorder %s90, %s91
    %p105 = scmp.eq.s32.totalorder %s15, 1
    %p106 = por %p104, %p105
    %p108 = scmp.ne.s32.totalorder %s91, %s107
    %p109 = scmp.eq.s32.totalorder %s15, 0
    %p110 = por %p108, %p109
    %p111 = scmp.le.s32.totalorder 1, %s9
    %p112 = scmp.lt.s32.totalorder %s9, 3
    %p113 = pnand %p111, %p112
    %p114 = pneg %p113
    // Predicated region
    $region9: #{upconv.1} parent=5 // pred_check
      _
    $region10: #{upconv.1} parent=5 // pred_check_branch
      %116 = sbr.rel (%p113) target = $region12
    $region11: #{upconv.1} parent=5 // pred_region
      %s117 = ssub.s32 %s9, 1
      // Predicated region
      $region13: #{upconv.1} parent=11 // pred_check
        %p118 = pneg %p56
      $region14: #{upconv.1} parent=11 // pred_check_branch
        %120 = sbr.rel (%p118) target = $region16
      $region15: #{upconv.1} parent=11 // pred_region
        _
      $region16: #{upconv.1} parent=11 // pred_fallthru
        _
      // Predicated region
      $region17: #{upconv.1} parent=11 // pred_check
        %p121 = pneg %p77
      $region18: #{upconv.1} parent=11 // pred_check_branch
        %123 = sbr.rel (%p121) target = $region20
      $region19: #{upconv.1} parent=11 // pred_region
        _
      $region20: #{upconv.1} parent=11 // pred_fallthru
        _
    $region12: #{upconv.1} parent=5 // pred_fallthru
      _
    %p124 = scmp.lt.s32.totalorder %s9, 2
    // Predicated region
    $region21: #{upconv.1} parent=5 // pred_check
      %p125 = pneg %p124
    $region22: #{upconv.1} parent=5 // pred_check_branch
      %127 = sbr.rel (%p125) target = $region24
    $region23: #{upconv.1} parent=5 // pred_region
      // Predicated region
      $region25: #{upconv.1} parent=23 // pred_check
        %p128 = pneg %p29
      $region26: #{upconv.1} parent=23 // pred_check_branch
        %130 = sbr.rel (%p128) target = $region28
      $region27: #{upconv.1} parent=23 // pred_region
        %p131 = scmp.lt.s32.totalorder %s9, 1
        %s132 = scalar_select %p131, %s9, 1
        %s133 = smul.addr %s132, 2
        %s134 = smul.addr %s133, 4
        %s135 = scalar_lea.vmem %s0, %s134
      $region28: #{upconv.1} parent=23 // pred_fallthru
        _
    $region24: #{upconv.1} parent=5 // pred_fallthru
      _
    %p136 = scmp.le.s32.totalorder 1, %s9
    %p137 = scmp.lt.s32.totalorder %s9, 3
    %p138 = pnand %p136, %p137
    %p139 = pneg %p138
    // Predicated region
    $region29: #{upconv.1} parent=5 // pred_check
      _
    $region30: #{upconv.1} parent=5 // pred_check_branch
      %141 = sbr.rel (%p138) target = $region32
    $region31: #{upconv.1} parent=5 // pred_region
      %s142 = ssub.s32 %s9, 1
      %p143 = scmp.lt.s32.totalorder %s14, 1
      %s144 = scalar_select %p143, %s14, 1
      %s145 = smul.addr %s144, 2
      %s146 = smul.addr %s145, 4
      %s147 = scalar_lea.vmem %s0, %s146
      %p148 = pneg %p35
      %p149 = pneg %p32
      %p150 = pneg %p56
      %p151 = pneg %p53
      %p152 = pneg %p77
      %p153 = pneg %p74
      %p154 = pneg %p103
      %p155 = pneg %p100
      %p156 = scmp.lt.s32.totalorder %s14, 1
      %s157 = scalar_select %p156, %s14, 1
      %s158 = smul.addr %s157, 8
      %s159 = smul.addr %s158, 8
      %s160 = scalar_lea.vmem %s3, %s159
      %p161 = scmp.lt.s32.totalorder %s14, 1
      %s162 = scalar_select %p161, %s14, 1
      %s163 = smul.addr %s162, 2
      %s164 = smul.addr %s163, 4
      %s165 = scalar_lea.vmem %s0, %s164
      %p166 = scmp.lt.s32.totalorder %s14, 1
      %s167 = scalar_select %p166, %s14, 1
      %s168 = smul.addr %s167, 8
      %s169 = smul.addr %s168, 8
      %s170 = scalar_lea.vmem %s3, %s169
      %v172 = vld [vmem:[%s165] sm:$0xff]
      %v173 = vlaneseq
      %v174 = vand.u32 %v173, 127
      %v175 = vadd.s32 %v174, 128
      %v176 = vand.u32 %v174, 15
      %v177 = vand.u32 %v175, 15
      %v179 = vcombine.high %v172, %v172
      %181 = vrot.lane.b32.xlu0 %v172, 17
      %v182 = vpop.permute.xlu0 %181
      %183 = vrot.lane.b32.xlu0 %v179, 17
      %v184 = vpop.permute.xlu0 %183
      %vm185 = vcmp.lt.s32.totalorder %v174, 17
      %v186 = vsel %vm185, %v182, %v184
      %v187 = vsel %vm185, %v184, %v182
      %vm188 = vcmp.ge.s32.totalorder %v174, 16
      %vm189 = vcmp.ge.s32.totalorder %v175, 16
      %vm190 = vcmp.ge.s32.totalorder %v176, 1
      %vm191 = vcmp.ge.s32.totalorder %v177, 1
      %vm192 = vmand %vm188, %vm190
      %vm193 = vmand %vm189, %vm191
      %v194 = vsel %vm192, 1, 0
      %v195 = vsel %vm193, 1, 0
      %vm196 = vcmp.eq.s32.totalorder %v194, 1
      %vm197 = vcmp.eq.s32.totalorder %v195, 1
      %v198 = vsel %vm196, %v187, 0.0
      %v199 = vsel %vm197, %v186, 0.0
      %v200 = vld [vmem:[%s1] sm:$0xf]
      %v201 = vld [vmem:[%s1 + $0x4] sm:$0xf]
      %v202 = vld [vmem:[%s1 + $0x8] sm:$0xf]
      %v203 = vld [vmem:[%s1 + $0xc] sm:$0xf]
      %v204 = vpack.c.bf16 %v198, %v198
      %v205 = vpack.c.bf16 %v199, %v199
      %206 = vrot.lane.b32.xlu0 %v172, 16
      %v207 = vpop.permute.xlu0 %206
      %208 = vrot.lane.b32.xlu0 %v179, 16
      %v209 = vpop.permute.xlu0 %208
      %vm210 = vcmp.lt.s32.totalorder %v174, 16
      %v211 = vsel %vm210, %v207, %v209
      %v212 = vsel %vm210, %v209, %v207
      %v213 = vsel %vm188, 1, 0
      %v214 = vsel %vm189, 1, 0
      %vm215 = vcmp.eq.s32.totalorder %v213, 1
      %vm216 = vcmp.eq.s32.totalorder %v214, 1
      %v217 = vsel %vm215, %v212, 0.0
      %v218 = vsel %vm216, %v211, 0.0
      %s219 = scalar_lea.vmem %s1, 16
      %v220 = vld [vmem:[%s219] sm:$0xf]
      %v221 = vld [vmem:[%s219 + $0x4] sm:$0xf]
      %v222 = vld [vmem:[%s219 + $0x8] sm:$0xf]
      %v223 = vld [vmem:[%s219 + $0xc] sm:$0xf]
      %v224 = vpack.c.bf16 %v217, %v217
      %v225 = vpack.c.bf16 %v218, %v218
      %v230 = vunpack.c.l.b16 %v220
      %v231 = vunpack.c.l.b16 %v221
      %v232 = vunpack.c.l.b16 %v222
      %v233 = vunpack.c.l.b16 %v223
      %v234 = vpack.c.b16 %v231, %v230
      %v235 = vpack.c.b16 %v233, %v232
      %vm236 = vcmask 31744
      %v238 = vsel %vm236, %v234, 0
      %v241 = vsel %vm236, %v235, 0
      %vm243 = vcmask 1041408
      %v245 = vsel %vm243, %v224, 0
      %v248 = vsel %vm243, %v225, 0
      %250 = vmatprep.subr.bf16.mxu0 %v248
      %251 = vmatpush1.bf16.msra.mxu0 %v245
      %252 = vmatprep.subr.bf16.mxu0 0
      %253 = vmatpush1.bf16.msra.mxu0 0
      %254 = vmatprep.subr.bf16.mxu0 0
      %255 = vmatpush1.bf16.msra.mxu0 0
      %256 = vmatprep.subr.bf16.mxu0 0
      %257 = vmatpush1.bf16.msra.mxu0 0
      %258 = vmatprep.subr.bf16.mxu0 0
      %259 = vmatpush1.bf16.msra.mxu0 0
      %260 = vmatprep.subr.bf16.mxu0 0
      %261 = vmatpush1.bf16.msra.mxu0 0
      %262 = vmatprep.subr.bf16.mxu0 0
      %263 = vmatpush1.bf16.msra.mxu0 0
      %264 = vmatprep.subr.bf16.mxu0 0
      %265 = vmatpush1.bf16.msra.mxu0 0
      %266 = vmatprep.subr.bf16.mxu0 0
      %267 = vmatpush1.bf16.msra.mxu0 0
      %268 = vmatprep.subr.bf16.mxu0 0
      %269 = vmatpush1.bf16.msra.mxu0 0
      %270 = vmatprep.subr.bf16.mxu0 0
      %271 = vmatpush1.bf16.msra.mxu0 0
      %272 = vmatprep.subr.bf16.mxu0 0
      %273 = vmatpush1.bf16.msra.mxu0 0
      %274 = vmatprep.subr.bf16.mxu0 0
      %275 = vmatpush1.bf16.msra.mxu0 0
      %276 = vmatprep.subr.bf16.mxu0 0
      %277 = vmatpush1.bf16.msra.mxu0 0
      %278 = vmatprep.subr.bf16.mxu0 0
      %279 = vmatpush1.bf16.msra.mxu0 0
      %280 = vmatprep.subr.bf16.mxu0 0
      %281 = vmatpush1.bf16.msra.mxu0 0
      %282 = vmatprep.mubr.bf16.mxu0 0
      %283 = vmatmul.mubr.bf16.gmra.mrb[0].mxu0 %v238
      %v284 = vpop.f32.mrb[0].mxu0
      %v285 = vadd.f32 0.0, %v284
      %v286 = vpop.f32.mrb[0].mxu0
      %v287 = vadd.f32 0.0, %v286
      %v288 = vpop.f32.mrb[0].mxu0
      %v289 = vadd.f32 0.0, %v288
      %v290 = vpop.f32.mrb[0].mxu0
      %v291 = vadd.f32 0.0, %v290
      %292 = vmatprep.mubr.bf16.mxu0 0
      %293 = vmatmul.mubr.bf16.gmra.mrb[0].mxu0 %v241
      %v294 = vpop.f32.mrb[0].mxu0
      %v295 = vadd.f32 0.0, %v294
      %v296 = vpop.f32.mrb[0].mxu0
      %v297 = vadd.f32 0.0, %v296
      %v298 = vpop.f32.mrb[0].mxu0
      %v299 = vadd.f32 0.0, %v298
      %v300 = vpop.f32.mrb[0].mxu0
      %v301 = vadd.f32 0.0, %v300
      %302 = vdwg.mxu0
      %v307 = vunpack.c.l.b16 %v200
      %v308 = vunpack.c.l.b16 %v201
      %v309 = vunpack.c.l.b16 %v202
      %v310 = vunpack.c.l.b16 %v203
      %v311 = vpack.c.b16 %v308, %v307
      %v312 = vpack.c.b16 %v310, %v309
      %v314 = vsel %vm236, %v311, 0
      %v317 = vsel %vm236, %v312, 0
      %v320 = vsel %vm243, %v204, 0
      %v323 = vsel %vm243, %v205, 0
      %325 = vmatprep.subr.bf16.mxu0 %v323
      %326 = vmatpush1.bf16.msra.mxu0 %v320
      %327 = vmatprep.subr.bf16.mxu0 0
      %328 = vmatpush1.bf16.msra.mxu0 0
      %329 = vmatprep.subr.bf16.mxu0 0
      %330 = vmatpush1.bf16.msra.mxu0 0
      %331 = vmatprep.subr.bf16.mxu0 0
      %332 = vmatpush1.bf16.msra.mxu0 0
      %333 = vmatprep.subr.bf16.mxu0 0
      %334 = vmatpush1.bf16.msra.mxu0 0
      %335 = vmatprep.subr.bf16.mxu0 0
      %336 = vmatpush1.bf16.msra.mxu0 0
      %337 = vmatprep.subr.bf16.mxu0 0
      %338 = vmatpush1.bf16.msra.mxu0 0
      %339 = vmatprep.subr.bf16.mxu0 0
      %340 = vmatpush1.bf16.msra.mxu0 0
      %341 = vmatprep.subr.bf16.mxu0 0
      %342 = vmatpush1.bf16.msra.mxu0 0
      %343 = vmatprep.subr.bf16.mxu0 0
      %344 = vmatpush1.bf16.msra.mxu0 0
      %345 = vmatprep.subr.bf16.mxu0 0
      %346 = vmatpush1.bf16.msra.mxu0 0
      %347 = vmatprep.subr.bf16.mxu0 0
      %348 = vmatpush1.bf16.msra.mxu0 0
      %349 = vmatprep.subr.bf16.mxu0 0
      %350 = vmatpush1.bf16.msra.mxu0 0
      %351 = vmatprep.subr.bf16.mxu0 0
      %352 = vmatpush1.bf16.msra.mxu0 0
      %353 = vmatprep.subr.bf16.mxu0 0
      %354 = vmatpush1.bf16.msra.mxu0 0
      %355 = vmatprep.subr.bf16.mxu0 0
      %356 = vmatpush1.bf16.msra.mxu0 0
      %357 = vmatprep.mubr.bf16.mxu0 0
      %358 = vmatmul.mubr.bf16.gmra.mrb[0].mxu0 %v314
      %v359 = vpop.f32.mrb[0].mxu0
      %v360 = vadd.f32 %v285, %v359
      %v361 = vpop.f32.mrb[0].mxu0
      %v362 = vadd.f32 %v287, %v361
      %v363 = vpop.f32.mrb[0].mxu0
      %v364 = vadd.f32 %v289, %v363
      %v365 = vpop.f32.mrb[0].mxu0
      %v366 = vadd.f32 %v291, %v365
      %367 = vmatprep.mubr.bf16.mxu0 0
      %368 = vmatmul.mubr.bf16.gmra.mrb[0].mxu0 %v317
      %v369 = vpop.f32.mrb[0].mxu0
      %v370 = vadd.f32 %v295, %v369
      %v371 = vpop.f32.mrb[0].mxu0
      %v372 = vadd.f32 %v297, %v371
      %v373 = vpop.f32.mrb[0].mxu0
      %v374 = vadd.f32 %v299, %v373
      %v375 = vpop.f32.mrb[0].mxu0
      %v376 = vadd.f32 %v301, %v375
      %377 = vdwg.mxu0
      %378 = vrot.lane.b32.xlu0 %v172, 15
      %v379 = vpop.permute.xlu0 %378
      %380 = vrot.lane.b32.xlu0 %v179, 15
      %v381 = vpop.permute.xlu0 %380
      %vm382 = vcmp.lt.s32.totalorder %v174, 15
      %v383 = vsel %vm382, %v379, %v381
      %v384 = vsel %vm382, %v381, %v379
      %vm385 = vcmp.lt.s32.totalorder %v176, 15
      %vm386 = vcmp.lt.s32.totalorder %v177, 15
      %vm387 = vmand %vm188, %vm385
      %vm388 = vmand %vm189, %vm386
      %v389 = vsel %vm387, 1, 0
      %v390 = vsel %vm388, 1, 0
      %vm391 = vcmp.eq.s32.totalorder %v389, 1
      %vm392 = vcmp.eq.s32.totalorder %v390, 1
      %v393 = vsel %vm391, %v384, 0.0
      %v394 = vsel %vm392, %v383, 0.0
      %s395 = scalar_lea.vmem %s1, 32
      %v396 = vld [vmem:[%s395] sm:$0xf]
      %v397 = vld [vmem:[%s395 + $0x4] sm:$0xf]
      %v398 = vld [vmem:[%s395 + $0x8] sm:$0xf]
      %v399 = vld [vmem:[%s395 + $0xc] sm:$0xf]
      %v400 = vpack.c.bf16 %v393, %v393
      %v401 = vpack.c.bf16 %v394, %v394
      %v406 = vunpack.c.l.b16 %v396
      %v407 = vunpack.c.l.b16 %v397
      %v408 = vunpack.c.l.b16 %v398
      %v409 = vunpack.c.l.b16 %v399
      %v410 = vpack.c.b16 %v407, %v406
      %v411 = vpack.c.b16 %v409, %v408
      %v413 = vsel %vm236, %v410, 0
      %v416 = vsel %vm236, %v411, 0
      %v419 = vsel %vm243, %v400, 0
      %v422 = vsel %vm243, %v401, 0
      %424 = vmatprep.subr.bf16.mxu0 %v422
      %425 = vmatpush1.bf16.msra.mxu0 %v419
      %426 = vmatprep.subr.bf16.mxu0 0
      %427 = vmatpush1.bf16.msra.mxu0 0
      %428 = vmatprep.subr.bf16.mxu0 0
      %429 = vmatpush1.bf16.msra.mxu0 0
      %430 = vmatprep.subr.bf16.mxu0 0
      %431 = vmatpush1.bf16.msra.mxu0 0
      %432 = vmatprep.subr.bf16.mxu0 0
      %433 = vmatpush1.bf16.msra.mxu0 0
      %434 = vmatprep.subr.bf16.mxu0 0
      %435 = vmatpush1.bf16.msra.mxu0 0
      %436 = vmatprep.subr.bf16.mxu0 0
      %437 = vmatpush1.bf16.msra.mxu0 0
      %438 = vmatprep.subr.bf16.mxu0 0
      %439 = vmatpush1.bf16.msra.mxu0 0
      %440 = vmatprep.subr.bf16.mxu0 0
      %441 = vmatpush1.bf16.msra.mxu0 0
      %442 = vmatprep.subr.bf16.mxu0 0
      %443 = vmatpush1.bf16.msra.mxu0 0
      %444 = vmatprep.subr.bf16.mxu0 0
      %445 = vmatpush1.bf16.msra.mxu0 0
      %446 = vmatprep.subr.bf16.mxu0 0
      %447 = vmatpush1.bf16.msra.mxu0 0
      %448 = vmatprep.subr.bf16.mxu0 0
      %449 = vmatpush1.bf16.msra.mxu0 0
      %450 = vmatprep.subr.bf16.mxu0 0
      %451 = vmatpush1.bf16.msra.mxu0 0
      %452 = vmatprep.subr.bf16.mxu0 0
      %453 = vmatpush1.bf16.msra.mxu0 0
      %454 = vmatprep.subr.bf16.mxu0 0
      %455 = vmatpush1.bf16.msra.mxu0 0
      %456 = vmatprep.mubr.bf16.mxu0 0
      %457 = vmatmul.mubr.bf16.gmra.mrb[0].mxu0 %v413
      %v458 = vpop.f32.mrb[0].mxu0
      %v459 = vadd.f32 0.0, %v458
      %v460 = vpop.f32.mrb[0].mxu0
      %v461 = vadd.f32 0.0, %v460
      %v462 = vpop.f32.mrb[0].mxu0
      %v463 = vadd.f32 0.0, %v462
      %v464 = vpop.f32.mrb[0].mxu0
      %v465 = vadd.f32 0.0, %v464
      %466 = vmatprep.mubr.bf16.mxu0 0
      %467 = vmatmul.mubr.bf16.gmra.mrb[0].mxu0 %v416
      %v468 = vpop.f32.mrb[0].mxu0
      %v469 = vadd.f32 0.0, %v468
      %v470 = vpop.f32.mrb[0].mxu0
      %v471 = vadd.f32 0.0, %v470
      %v472 = vpop.f32.mrb[0].mxu0
      %v473 = vadd.f32 0.0, %v472
      %v474 = vpop.f32.mrb[0].mxu0
      %v475 = vadd.f32 0.0, %v474
      %476 = vdwg.mxu0
      %v477 = vadd.f32 %v360, %v459
      %v478 = vadd.f32 %v362, %v461
      %v479 = vadd.f32 %v364, %v463
      %v480 = vadd.f32 %v366, %v465
      %v481 = vadd.f32 %v370, %v469
      %v482 = vadd.f32 %v372, %v471
      %v483 = vadd.f32 %v374, %v473
      %v484 = vadd.f32 %v376, %v475
      %485 = vrot.lane.b32.xlu0 %v172, 1
      %v486 = vpop.permute.xlu0 %485
      %487 = vrot.lane.b32.xlu0 %v179, 1
      %v488 = vpop.permute.xlu0 %487
      %vm489 = vcmp.lt.s32.totalorder %v174, 1
      %v490 = vsel %vm489, %v486, %v488
      %v491 = vsel %vm489, %v488, %v486
      %v492 = vsel %vm190, 1, 0
      %v493 = vsel %vm191, 1, 0
      %vm494 = vcmp.eq.s32.totalorder %v492, 1
      %vm495 = vcmp.eq.s32.totalorder %v493, 1
      %v496 = vsel %vm494, %v491, 0.0
      %v497 = vsel %vm495, %v490, 0.0
      %s498 = scalar_lea.vmem %s1, 48
      %v499 = vld [vmem:[%s498] sm:$0xf]
      %v500 = vld [vmem:[%s498 + $0x4] sm:$0xf]
      %v501 = vld [vmem:[%s498 + $0x8] sm:$0xf]
      %v502 = vld [vmem:[%s498 + $0xc] sm:$0xf]
      %v503 = vpack.c.bf16 %v496, %v496
      %v504 = vpack.c.bf16 %v497, %v497
      %v509 = vunpack.c.l.b16 %v499
      %v510 = vunpack.c.l.b16 %v500
      %v511 = vunpack.c.l.b16 %v501
      %v512 = vunpack.c.l.b16 %v502
      %v513 = vpack.c.b16 %v510, %v509
      %v514 = vpack.c.b16 %v512, %v511
      %v516 = vsel %vm236, %v513, 0
      %v519 = vsel %vm236, %v514, 0
      %v522 = vsel %vm243, %v503, 0
      %v525 = vsel %vm243, %v504, 0
      %527 = vmatprep.subr.bf16.mxu0 %v525
      %528 = vmatpush1.bf16.msra.mxu0 %v522
      %529 = vmatprep.subr.bf16.mxu0 0
      %530 = vmatpush1.bf16.msra.mxu0 0
      %531 = vmatprep.subr.bf16.mxu0 0
      %532 = vmatpush1.bf16.msra.mxu0 0
      %533 = vmatprep.subr.bf16.mxu0 0
      %534 = vmatpush1.bf16.msra.mxu0 0
      %535 = vmatprep.subr.bf16.mxu0 0
      %536 = vmatpush1.bf16.msra.mxu0 0
      %537 = vmatprep.subr.bf16.mxu0 0
      %538 = vmatpush1.bf16.msra.mxu0 0
      %539 = vmatprep.subr.bf16.mxu0 0
      %540 = vmatpush1.bf16.msra.mxu0 0
      %541 = vmatprep.subr.bf16.mxu0 0
      %542 = vmatpush1.bf16.msra.mxu0 0
      %543 = vmatprep.subr.bf16.mxu0 0
      %544 = vmatpush1.bf16.msra.mxu0 0
      %545 = vmatprep.subr.bf16.mxu0 0
      %546 = vmatpush1.bf16.msra.mxu0 0
      %547 = vmatprep.subr.bf16.mxu0 0
      %548 = vmatpush1.bf16.msra.mxu0 0
      %549 = vmatprep.subr.bf16.mxu0 0
      %550 = vmatpush1.bf16.msra.mxu0 0
      %551 = vmatprep.subr.bf16.mxu0 0
      %552 = vmatpush1.bf16.msra.mxu0 0
      %553 = vmatprep.subr.bf16.mxu0 0
      %554 = vmatpush1.bf16.msra.mxu0 0
      %555 = vmatprep.subr.bf16.mxu0 0
      %556 = vmatpush1.bf16.msra.mxu0 0
      %557 = vmatprep.subr.bf16.mxu0 0
      %558 = vmatpush1.bf16.msra.mxu0 0
      %559 = vmatprep.mubr.bf16.mxu0 0
      %560 = vmatmul.mubr.bf16.gmra.mrb[0].mxu0 %v516
      %v561 = vpop.f32.mrb[0].mxu0
      %v562 = vadd.f32 0.0, %v561
      %v563 = vpop.f32.mrb[0].mxu0
      %v564 = vadd.f32 0.0, %v563
      %v565 = vpop.f32.mrb[0].mxu0
      %v566 = vadd.f32 0.0, %v565
      %v567 = vpop.f32.mrb[0].mxu0
      %v568 = vadd.f32 0.0, %v567
      %569 = vmatprep.mubr.bf16.mxu0 0
      %570 = vmatmul.mubr.bf16.gmra.mrb[0].mxu0 %v519
      %v571 = vpop.f32.mrb[0].mxu0
      %v572 = vadd.f32 0.0, %v571
      %v573 = vpop.f32.mrb[0].mxu0
      %v574 = vadd.f32 0.0, %v573
      %v575 = vpop.f32.mrb[0].mxu0
      %v576 = vadd.f32 0.0, %v575
      %v577 = vpop.f32.mrb[0].mxu0
      %v578 = vadd.f32 0.0, %v577
      %579 = vdwg.mxu0
      %v580 = vadd.f32 %v477, %v562
      %v581 = vadd.f32 %v478, %v564
      %v582 = vadd.f32 %v479, %v566
      %v583 = vadd.f32 %v480, %v568
      %v584 = vadd.f32 %v481, %v572
      %v585 = vadd.f32 %v482, %v574
      %v586 = vadd.f32 %v483, %v576
      %v587 = vadd.f32 %v484, %v578
      %s588 = scalar_lea.vmem %s1, 64
      %v589 = vld [vmem:[%s588] sm:$0xf]
      %v590 = vld [vmem:[%s588 + $0x4] sm:$0xf]
      %v591 = vld [vmem:[%s588 + $0x8] sm:$0xf]
      %v592 = vld [vmem:[%s588 + $0xc] sm:$0xf]
      %v593 = vpack.c.bf16 %v172, %v172
      %v594 = vpack.c.bf16 %v179, %v179
      %v599 = vunpack.c.l.b16 %v589
      %v600 = vunpack.c.l.b16 %v590
      %v601 = vunpack.c.l.b16 %v591
      %v602 = vunpack.c.l.b16 %v592
      %v603 = vpack.c.b16 %v600, %v599
      %v604 = vpack.c.b16 %v602, %v601
      %v606 = vsel %vm236, %v603, 0
      %v609 = vsel %vm236, %v604, 0
      %v612 = vsel %vm243, %v593, 0
      %v615 = vsel %vm243, %v594, 0
      %617 = vmatprep.subr.bf16.mxu0 %v615
      %618 = vmatpush1.bf16.msra.mxu0 %v612
      %619 = vmatprep.subr.bf16.mxu0 0
      %620 = vmatpush1.bf16.msra.mxu0 0
      %621 = vmatprep.subr.bf16.mxu0 0
      %622 = vmatpush1.bf16.msra.mxu0 0
      %623 = vmatprep.subr.bf16.mxu0 0
      %624 = vmatpush1.bf16.msra.mxu0 0
      %625 = vmatprep.subr.bf16.mxu0 0
      %626 = vmatpush1.bf16.msra.mxu0 0
      %627 = vmatprep.subr.bf16.mxu0 0
      %628 = vmatpush1.bf16.msra.mxu0 0
      %629 = vmatprep.subr.bf16.mxu0 0
      %630 = vmatpush1.bf16.msra.mxu0 0
      %631 = vmatprep.subr.bf16.mxu0 0
      %632 = vmatpush1.bf16.msra.mxu0 0
      %633 = vmatprep.subr.bf16.mxu0 0
      %634 = vmatpush1.bf16.msra.mxu0 0
      %635 = vmatprep.subr.bf16.mxu0 0
      %636 = vmatpush1.bf16.msra.mxu0 0
      %637 = vmatprep.subr.bf16.mxu0 0
      %638 = vmatpush1.bf16.msra.mxu0 0
      %639 = vmatprep.subr.bf16.mxu0 0
      %640 = vmatpush1.bf16.msra.mxu0 0
      %641 = vmatprep.subr.bf16.mxu0 0
      %642 = vmatpush1.bf16.msra.mxu0 0
      %643 = vmatprep.subr.bf16.mxu0 0
      %644 = vmatpush1.bf16.msra.mxu0 0
      %645 = vmatprep.subr.bf16.mxu0 0
      %646 = vmatpush1.bf16.msra.mxu0 0
      %647 = vmatprep.subr.bf16.mxu0 0
      %648 = vmatpush1.bf16.msra.mxu0 0
      %649 = vmatprep.mubr.bf16.mxu0 0
      %650 = vmatmul.mubr.bf16.gmra.mrb[0].mxu0 %v606
      %v651 = vpop.f32.mrb[0].mxu0
      %v652 = vadd.f32 0.0, %v651
      %v653 = vpop.f32.mrb[0].mxu0
      %v654 = vadd.f32 0.0, %v653
      %v655 = vpop.f32.mrb[0].mxu0
      %v656 = vadd.f32 0.0, %v655
      %v657 = vpop.f32.mrb[0].mxu0
      %v658 = vadd.f32 0.0, %v657
      %659 = vmatprep.mubr.bf16.mxu0 0
      %660 = vmatmul.mubr.bf16.gmra.mrb[0].mxu0 %v609
      %v661 = vpop.f32.mrb[0].mxu0
      %v662 = vadd.f32 0.0, %v661
      %v663 = vpop.f32.mrb[0].mxu0
      %v664 = vadd.f32 0.0, %v663
      %v665 = vpop.f32.mrb[0].mxu0
      %v666 = vadd.f32 0.0, %v665
      %v667 = vpop.f32.mrb[0].mxu0
      %v668 = vadd.f32 0.0, %v667
      %669 = vdwg.mxu0
      %v670 = vadd.f32 %v580, %v652
      %v671 = vadd.f32 %v581, %v654
      %v672 = vadd.f32 %v582, %v656
      %v673 = vadd.f32 %v583, %v658
      %v674 = vadd.f32 %v584, %v662
      %v675 = vadd.f32 %v585, %v664
      %v676 = vadd.f32 %v586, %v666
      %v677 = vadd.f32 %v587, %v668
      %678 = vrot.lane.b32.xlu0 %v172, 127
      %v679 = vpop.permute.xlu0 %678
      %680 = vrot.lane.b32.xlu0 %v179, 127
      %v681 = vpop.permute.xlu0 %680
      %vm682 = vcmp.lt.s32.totalorder %v174, 127
      %v683 = vsel %vm682, %v679, %v681
      %v684 = vsel %vm682, %v681, %v679
      %v685 = vsel %vm385, 1, 0
      %v686 = vsel %vm386, 1, 0
      %vm687 = vcmp.eq.s32.totalorder %v685, 1
      %vm688 = vcmp.eq.s32.totalorder %v686, 1
      %v689 = vsel %vm687, %v683, 0.0
      %v690 = vsel %vm688, %v684, 0.0
      %s691 = scalar_lea.vmem %s1, 80
      %v692 = vld [vmem:[%s691] sm:$0xf]
      %v693 = vld [vmem:[%s691 + $0x4] sm:$0xf]
      %v694 = vld [vmem:[%s691 + $0x8] sm:$0xf]
      %v695 = vld [vmem:[%s691 + $0xc] sm:$0xf]
      %v696 = vpack.c.bf16 %v689, %v689
      %v697 = vpack.c.bf16 %v690, %v690
      %v702 = vunpack.c.l.b16 %v692
      %v703 = vunpack.c.l.b16 %v693
      %v704 = vunpack.c.l.b16 %v694
      %v705 = vunpack.c.l.b16 %v695
      %v706 = vpack.c.b16 %v703, %v702
      %v707 = vpack.c.b16 %v705, %v704
      %v709 = vsel %vm236, %v706, 0
      %v712 = vsel %vm236, %v707, 0
      %v715 = vsel %vm243, %v696, 0
      %v718 = vsel %vm243, %v697, 0
      %720 = vmatprep.subr.bf16.mxu0 %v718
      %721 = vmatpush1.bf16.msra.mxu0 %v715
      %722 = vmatprep.subr.bf16.mxu0 0
      %723 = vmatpush1.bf16.msra.mxu0 0
      %724 = vmatprep.subr.bf16.mxu0 0
      %725 = vmatpush1.bf16.msra.mxu0 0
      %726 = vmatprep.subr.bf16.mxu0 0
      %727 = vmatpush1.bf16.msra.mxu0 0
      %728 = vmatprep.subr.bf16.mxu0 0
      %729 = vmatpush1.bf16.msra.mxu0 0
      %730 = vmatprep.subr.bf16.mxu0 0
      %731 = vmatpush1.bf16.msra.mxu0 0
      %732 = vmatprep.subr.bf16.mxu0 0
      %733 = vmatpush1.bf16.msra.mxu0 0
      %734 = vmatprep.subr.bf16.mxu0 0
      %735 = vmatpush1.bf16.msra.mxu0 0
      %736 = vmatprep.subr.bf16.mxu0 0
      %737 = vmatpush1.bf16.msra.mxu0 0
      %738 = vmatprep.subr.bf16.mxu0 0
      %739 = vmatpush1.bf16.msra.mxu0 0
      %740 = vmatprep.subr.bf16.mxu0 0
      %741 = vmatpush1.bf16.msra.mxu0 0
      %742 = vmatprep.subr.bf16.mxu0 0
      %743 = vmatpush1.bf16.msra.mxu0 0
      %744 = vmatprep.subr.bf16.mxu0 0
      %745 = vmatpush1.bf16.msra.mxu0 0
      %746 = vmatprep.subr.bf16.mxu0 0
      %747 = vmatpush1.bf16.msra.mxu0 0
      %748 = vmatprep.subr.bf16.mxu0 0
      %749 = vmatpush1.bf16.msra.mxu0 0
      %750 = vmatprep.subr.bf16.mxu0 0
      %751 = vmatpush1.bf16.msra.mxu0 0
      %752 = vmatprep.mubr.bf16.mxu0 0
      %753 = vmatmul.mubr.bf16.gmra.mrb[0].mxu0 %v709
      %v754 = vpop.f32.mrb[0].mxu0
      %v755 = vadd.f32 0.0, %v754
      %v756 = vpop.f32.mrb[0].mxu0
      %v757 = vadd.f32 0.0, %v756
      %v758 = vpop.f32.mrb[0].mxu0
      %v759 = vadd.f32 0.0, %v758
      %v760 = vpop.f32.mrb[0].mxu0
      %v761 = vadd.f32 0.0, %v760
      %762 = vmatprep.mubr.bf16.mxu0 0
      %763 = vmatmul.mubr.bf16.gmra.mrb[0].mxu0 %v712
      %v764 = vpop.f32.mrb[0].mxu0
      %v765 = vadd.f32 0.0, %v764
      %v766 = vpop.f32.mrb[0].mxu0
      %v767 = vadd.f32 0.0, %v766
      %v768 = vpop.f32.mrb[0].mxu0
      %v769 = vadd.f32 0.0, %v768
      %v770 = vpop.f32.mrb[0].mxu0
      %v771 = vadd.f32 0.0, %v770
      %772 = vdwg.mxu0
      %v773 = vadd.f32 %v670, %v755
      %v774 = vadd.f32 %v671, %v757
      %v775 = vadd.f32 %v672, %v759
      %v776 = vadd.f32 %v673, %v761
      %v777 = vadd.f32 %v674, %v765
      %v778 = vadd.f32 %v675, %v767
      %v779 = vadd.f32 %v676, %v769
      %v780 = vadd.f32 %v677, %v771
      %781 = vrot.lane.b32.xlu0 %v172, 113
      %v782 = vpop.permute.xlu0 %781
      %783 = vrot.lane.b32.xlu0 %v179, 113
      %v784 = vpop.permute.xlu0 %783
      %vm785 = vcmp.lt.s32.totalorder %v174, 113
      %v786 = vsel %vm785, %v782, %v784
      %v787 = vsel %vm785, %v784, %v782
      %vm788 = vcmp.lt.s32.totalorder %v174, 240
      %vm789 = vcmp.lt.s32.totalorder %v175, 240
      %vm790 = vmand %vm788, %vm190
      %vm791 = vmand %vm789, %vm191
      %v792 = vsel %vm790, 1, 0
      %v793 = vsel %vm791, 1, 0
      %vm794 = vcmp.eq.s32.totalorder %v792, 1
      %vm795 = vcmp.eq.s32.totalorder %v793, 1
      %v796 = vsel %vm794, %v786, 0.0
      %v797 = vsel %vm795, %v787, 0.0
      %s798 = scalar_lea.vmem %s1, 96
      %v799 = vld [vmem:[%s798] sm:$0xf]
      %v800 = vld [vmem:[%s798 + $0x4] sm:$0xf]
      %v801 = vld [vmem:[%s798 + $0x8] sm:$0xf]
      %v802 = vld [vmem:[%s798 + $0xc] sm:$0xf]
      %v803 = vpack.c.bf16 %v796, %v796
      %v804 = vpack.c.bf16 %v797, %v797
      %v809 = vunpack.c.l.b16 %v799
      %v810 = vunpack.c.l.b16 %v800
      %v811 = vunpack.c.l.b16 %v801
      %v812 = vunpack.c.l.b16 %v802
      %v813 = vpack.c.b16 %v810, %v809
      %v814 = vpack.c.b16 %v812, %v811
      %v816 = vsel %vm236, %v813, 0
      %v819 = vsel %vm236, %v814, 0
      %v822 = vsel %vm243, %v803, 0
      %v825 = vsel %vm243, %v804, 0
      %827 = vmatprep.subr.bf16.mxu0 %v825
      %828 = vmatpush1.bf16.msra.mxu0 %v822
      %829 = vmatprep.subr.bf16.mxu0 0
      %830 = vmatpush1.bf16.msra.mxu0 0
      %831 = vmatprep.subr.bf16.mxu0 0
      %832 = vmatpush1.bf16.msra.mxu0 0
      %833 = vmatprep.subr.bf16.mxu0 0
      %834 = vmatpush1.bf16.msra.mxu0 0
      %835 = vmatprep.subr.bf16.mxu0 0
      %836 = vmatpush1.bf16.msra.mxu0 0
      %837 = vmatprep.subr.bf16.mxu0 0
      %838 = vmatpush1.bf16.msra.mxu0 0
      %839 = vmatprep.subr.bf16.mxu0 0
      %840 = vmatpush1.bf16.msra.mxu0 0
      %841 = vmatprep.subr.bf16.mxu0 0
      %842 = vmatpush1.bf16.msra.mxu0 0
      %843 = vmatprep.subr.bf16.mxu0 0
      %844 = vmatpush1.bf16.msra.mxu0 0
      %845 = vmatprep.subr.bf16.mxu0 0
      %846 = vmatpush1.bf16.msra.mxu0 0
      %847 = vmatprep.subr.bf16.mxu0 0
      %848 = vmatpush1.bf16.msra.mxu0 0
      %849 = vmatprep.subr.bf16.mxu0 0
      %850 = vmatpush1.bf16.msra.mxu0 0
      %851 = vmatprep.subr.bf16.mxu0 0
      %852 = vmatpush1.bf16.msra.mxu0 0
      %853 = vmatprep.subr.bf16.mxu0 0
      %854 = vmatpush1.bf16.msra.mxu0 0
      %855 = vmatprep.subr.bf16.mxu0 0
      %856 = vmatpush1.bf16.msra.mxu0 0
      %857 = vmatprep.subr.bf16.mxu0 0
      %858 = vmatpush1.bf16.msra.mxu0 0
      %859 = vmatprep.mubr.bf16.mxu0 0
      %860 = vmatmul.mubr.bf16.gmra.mrb[0].mxu0 %v816
      %v861 = vpop.f32.mrb[0].mxu0
      %v862 = vadd.f32 0.0, %v861
      %v863 = vpop.f32.mrb[0].mxu0
      %v864 = vadd.f32 0.0, %v863
      %v865 = vpop.f32.mrb[0].mxu0
      %v866 = vadd.f32 0.0, %v865
      %v867 = vpop.f32.mrb[0].mxu0
      %v868 = vadd.f32 0.0, %v867
      %869 = vmatprep.mubr.bf16.mxu0 0
      %870 = vmatmul.mubr.bf16.gmra.mrb[0].mxu0 %v819
      %v871 = vpop.f32.mrb[0].mxu0
      %v872 = vadd.f32 0.0, %v871
      %v873 = vpop.f32.mrb[0].mxu0
      %v874 = vadd.f32 0.0, %v873
      %v875 = vpop.f32.mrb[0].mxu0
      %v876 = vadd.f32 0.0, %v875
      %v877 = vpop.f32.mrb[0].mxu0
      %v878 = vadd.f32 0.0, %v877
      %879 = vdwg.mxu0
      %v880 = vadd.f32 %v773, %v862
      %v881 = vadd.f32 %v774, %v864
      %v882 = vadd.f32 %v775, %v866
      %v883 = vadd.f32 %v776, %v868
      %v884 = vadd.f32 %v777, %v872
      %v885 = vadd.f32 %v778, %v874
      %v886 = vadd.f32 %v779, %v876
      %v887 = vadd.f32 %v780, %v878
      %888 = vrot.lane.b32.xlu0 %v172, 112
      %v889 = vpop.permute.xlu0 %888
      %890 = vrot.lane.b32.xlu0 %v179, 112
      %v891 = vpop.permute.xlu0 %890
      %vm892 = vcmp.lt.s32.totalorder %v174, 112
      %v893 = vsel %vm892, %v889, %v891
      %v894 = vsel %vm892, %v891, %v889
      %v895 = vsel %vm788, 1, 0
      %v896 = vsel %vm789, 1, 0
      %vm897 = vcmp.eq.s32.totalorder %v895, 1
      %vm898 = vcmp.eq.s32.totalorder %v896, 1
      %v899 = vsel %vm897, %v893, 0.0
      %v900 = vsel %vm898, %v894, 0.0
      %s901 = scalar_lea.vmem %s1, 112
      %v902 = vld [vmem:[%s901] sm:$0xf]
      %v903 = vld [vmem:[%s901 + $0x4] sm:$0xf]
      %v904 = vld [vmem:[%s901 + $0x8] sm:$0xf]
      %v905 = vld [vmem:[%s901 + $0xc] sm:$0xf]
      %v906 = vpack.c.bf16 %v899, %v899
      %v907 = vpack.c.bf16 %v900, %v900
      %v912 = vunpack.c.l.b16 %v902
      %v913 = vunpack.c.l.b16 %v903
      %v914 = vunpack.c.l.b16 %v904
      %v915 = vunpack.c.l.b16 %v905
      %v916 = vpack.c.b16 %v913, %v912
      %v917 = vpack.c.b16 %v915, %v914
      %v919 = vsel %vm236, %v916, 0
      %v922 = vsel %vm236, %v917, 0
      %v925 = vsel %vm243, %v906, 0
      %v928 = vsel %vm243, %v907, 0
      %930 = vmatprep.subr.bf16.mxu0 %v928
      %931 = vmatpush1.bf16.msra.mxu0 %v925
      %932 = vmatprep.subr.bf16.mxu0 0
      %933 = vmatpush1.bf16.msra.mxu0 0
      %934 = vmatprep.subr.bf16.mxu0 0
      %935 = vmatpush1.bf16.msra.mxu0 0
      %936 = vmatprep.subr.bf16.mxu0 0
      %937 = vmatpush1.bf16.msra.mxu0 0
      %938 = vmatprep.subr.bf16.mxu0 0
      %939 = vmatpush1.bf16.msra.mxu0 0
      %940 = vmatprep.subr.bf16.mxu0 0
      %941 = vmatpush1.bf16.msra.mxu0 0
      %942 = vmatprep.subr.bf16.mxu0 0
      %943 = vmatpush1.bf16.msra.mxu0 0
      %944 = vmatprep.subr.bf16.mxu0 0
      %945 = vmatpush1.bf16.msra.mxu0 0
      %946 = vmatprep.subr.bf16.mxu0 0
      %947 = vmatpush1.bf16.msra.mxu0 0
      %948 = vmatprep.subr.bf16.mxu0 0
      %949 = vmatpush1.bf16.msra.mxu0 0
      %950 = vmatprep.subr.bf16.mxu0 0
      %951 = vmatpush1.bf16.msra.mxu0 0
      %952 = vmatprep.subr.bf16.mxu0 0
      %953 = vmatpush1.bf16.msra.mxu0 0
      %954 = vmatprep.subr.bf16.mxu0 0
      %955 = vmatpush1.bf16.msra.mxu0 0
      %956 = vmatprep.subr.bf16.mxu0 0
      %957 = vmatpush1.bf16.msra.mxu0 0
      %958 = vmatprep.subr.bf16.mxu0 0
      %959 = vmatpush1.bf16.msra.mxu0 0
      %960 = vmatprep.subr.bf16.mxu0 0
      %961 = vmatpush1.bf16.msra.mxu0 0
      %962 = vmatprep.mubr.bf16.mxu0 0
      %963 = vmatmul.mubr.bf16.gmra.mrb[0].mxu0 %v919
      %v964 = vpop.f32.mrb[0].mxu0
      %v965 = vadd.f32 0.0, %v964
      %v966 = vpop.f32.mrb[0].mxu0
      %v967 = vadd.f32 0.0, %v966
      %v968 = vpop.f32.mrb[0].mxu0
      %v969 = vadd.f32 0.0, %v968
      %v970 = vpop.f32.mrb[0].mxu0
      %v971 = vadd.f32 0.0, %v970
      %972 = vmatprep.mubr.bf16.mxu0 0
      %973 = vmatmul.mubr.bf16.gmra.mrb[0].mxu0 %v922
      %v974 = vpop.f32.mrb[0].mxu0
      %v975 = vadd.f32 0.0, %v974
      %v976 = vpop.f32.mrb[0].mxu0
      %v977 = vadd.f32 0.0, %v976
      %v978 = vpop.f32.mrb[0].mxu0
      %v979 = vadd.f32 0.0, %v978
      %v980 = vpop.f32.mrb[0].mxu0
      %v981 = vadd.f32 0.0, %v980
      %982 = vdwg.mxu0
      %v983 = vadd.f32 %v880, %v965
      %v984 = vadd.f32 %v881, %v967
      %v985 = vadd.f32 %v882, %v969
      %v986 = vadd.f32 %v883, %v971
      %v987 = vadd.f32 %v884, %v975
      %v988 = vadd.f32 %v885, %v977
      %v989 = vadd.f32 %v886, %v979
      %v990 = vadd.f32 %v887, %v981
      %991 = vrot.lane.b32.xlu0 %v172, 111
      %v992 = vpop.permute.xlu0 %991
      %993 = vrot.lane.b32.xlu0 %v179, 111
      %v994 = vpop.permute.xlu0 %993
      %vm995 = vcmp.lt.s32.totalorder %v174, 111
      %v996 = vsel %vm995, %v992, %v994
      %v997 = vsel %vm995, %v994, %v992
      %vm998 = vmand %vm788, %vm385
      %vm999 = vmand %vm789, %vm386
      %v1000 = vsel %vm998, 1, 0
      %v1001 = vsel %vm999, 1, 0
      %vm1002 = vcmp.eq.s32.totalorder %v1000, 1
      %vm1003 = vcmp.eq.s32.totalorder %v1001, 1
      %v1004 = vsel %vm1002, %v996, 0.0
      %v1005 = vsel %vm1003, %v997, 0.0
      %s1006 = scalar_lea.vmem %s1, 128
      %v1007 = vld [vmem:[%s1006] sm:$0xf]
      %v1008 = vld [vmem:[%s1006 + $0x4] sm:$0xf]
      %v1009 = vld [vmem:[%s1006 + $0x8] sm:$0xf]
      %v1010 = vld [vmem:[%s1006 + $0xc] sm:$0xf]
      %v1011 = vpack.c.bf16 %v1004, %v1004
      %v1012 = vpack.c.bf16 %v1005, %v1005
      %v1017 = vunpack.c.l.b16 %v1007
      %v1018 = vunpack.c.l.b16 %v1008
      %v1019 = vunpack.c.l.b16 %v1009
      %v1020 = vunpack.c.l.b16 %v1010
      %v1021 = vpack.c.b16 %v1018, %v1017
      %v1022 = vpack.c.b16 %v1020, %v1019
      %v1024 = vsel %vm236, %v1021, 0
      %v1027 = vsel %vm236, %v1022, 0
      %v1030 = vsel %vm243, %v1011, 0
      %v1033 = vsel %vm243, %v1012, 0
      %1035 = vmatprep.subr.bf16.mxu0 %v1033
      %1036 = vmatpush1.bf16.msra.mxu0 %v1030
      %1037 = vmatprep.subr.bf16.mxu0 0
      %1038 = vmatpush1.bf16.msra.mxu0 0
      %1039 = vmatprep.subr.bf16.mxu0 0
      %1040 = vmatpush1.bf16.msra.mxu0 0
      %1041 = vmatprep.subr.bf16.mxu0 0
      %1042 = vmatpush1.bf16.msra.mxu0 0
      %1043 = vmatprep.subr.bf16.mxu0 0
      %1044 = vmatpush1.bf16.msra.mxu0 0
      %1045 = vmatprep.subr.bf16.mxu0 0
      %1046 = vmatpush1.bf16.msra.mxu0 0
      %1047 = vmatprep.subr.bf16.mxu0 0
      %1048 = vmatpush1.bf16.msra.mxu0 0
      %1049 = vmatprep.subr.bf16.mxu0 0
      %1050 = vmatpush1.bf16.msra.mxu0 0
      %1051 = vmatprep.subr.bf16.mxu0 0
      %1052 = vmatpush1.bf16.msra.mxu0 0
      %1053 = vmatprep.subr.bf16.mxu0 0
      %1054 = vmatpush1.bf16.msra.mxu0 0
      %1055 = vmatprep.subr.bf16.mxu0 0
      %1056 = vmatpush1.bf16.msra.mxu0 0
      %1057 = vmatprep.subr.bf16.mxu0 0
      %1058 = vmatpush1.bf16.msra.mxu0 0
      %1059 = vmatprep.subr.bf16.mxu0 0
      %1060 = vmatpush1.bf16.msra.mxu0 0
      %1061 = vmatprep.subr.bf16.mxu0 0
      %1062 = vmatpush1.bf16.msra.mxu0 0
      %1063 = vmatprep.subr.bf16.mxu0 0
      %1064 = vmatpush1.bf16.msra.mxu0 0
      %1065 = vmatprep.subr.bf16.mxu0 0
      %1066 = vmatpush1.bf16.msra.mxu0 0
      %1067 = vmatprep.mubr.bf16.mxu0 0
      %1068 = vmatmul.mubr.bf16.gmra.mrb[0].mxu0 %v1024
      %v1069 = vpop.f32.mrb[0].mxu0
      %v1070 = vadd.f32 0.0, %v1069
      %v1071 = vpop.f32.mrb[0].mxu0
      %v1072 = vadd.f32 0.0, %v1071
      %v1073 = vpop.f32.mrb[0].mxu0
      %v1074 = vadd.f32 0.0, %v1073
      %v1075 = vpop.f32.mrb[0].mxu0
      %v1076 = vadd.f32 0.0, %v1075
      %1077 = vmatprep.mubr.bf16.mxu0 0
      %1078 = vmatmul.mubr.bf16.gmra.mrb[0].mxu0 %v1027
      %v1079 = vpop.f32.mrb[0].mxu0
      %v1080 = vadd.f32 0.0, %v1079
      %v1081 = vpop.f32.mrb[0].mxu0
      %v1082 = vadd.f32 0.0, %v1081
      %v1083 = vpop.f32.mrb[0].mxu0
      %v1084 = vadd.f32 0.0, %v1083
      %v1085 = vpop.f32.mrb[0].mxu0
      %v1086 = vadd.f32 0.0, %v1085
      %1087 = vdwg.mxu0
      %v1088 = vadd.f32 %v983, %v1070
      %v1089 = vadd.f32 %v984, %v1072
      %v1090 = vadd.f32 %v985, %v1074
      %v1091 = vadd.f32 %v986, %v1076
      %v1092 = vadd.f32 %v987, %v1080
      %v1093 = vadd.f32 %v988, %v1082
      %v1094 = vadd.f32 %v989, %v1084
      %v1095 = vadd.f32 %v990, %v1086
      %v1096 = vld [vmem:[%s2] sm:$0xff]
      %v1097 = vld [vmem:[%s2 + $0x8] sm:$0xff]
      %v1098 = vld [vmem:[%s2 + $0x10] sm:$0xff]
      %v1099 = vld [vmem:[%s2 + $0x18] sm:$0xff]
      %1101 = vset.pattern.permute.xlu0 0
      %1102 = vperm.xlu0 %1101, %v1096
      %v1103 = vpop.permute.xlu0 %1102
      %1106 = vset.pattern.permute.xlu0 0
      %1107 = vperm.xlu0 %1106, %v1097
      %v1108 = vpop.permute.xlu0 %1107
      %1111 = vset.pattern.permute.xlu0 0
      %1112 = vperm.xlu0 %1111, %v1098
      %v1113 = vpop.permute.xlu0 %1112
      %1116 = vset.pattern.permute.xlu0 0
      %1117 = vperm.xlu0 %1116, %v1099
      %v1118 = vpop.permute.xlu0 %1117
      %v1120 = vadd.f32 %v1088, %v1103
      %v1121 = vadd.f32 %v1089, %v1103
      %v1122 = vadd.f32 %v1090, %v1108
      %v1123 = vadd.f32 %v1091, %v1108
      %v1124 = vadd.f32 %v1092, %v1113
      %v1125 = vadd.f32 %v1093, %v1113
      %v1126 = vadd.f32 %v1094, %v1118
      %v1127 = vadd.f32 %v1095, %v1118
      %1128 = vst [vmem:[%s170] sm:$0xff] %v1120
      %1129 = vst [vmem:[%s170 + $0x8] sm:$0xff] %v1121
      %1130 = vst [vmem:[%s170 + $0x10] sm:$0xff] %v1122
      %1131 = vst [vmem:[%s170 + $0x18] sm:$0xff] %v1123
      %1132 = vst [vmem:[%s170 + $0x20] sm:$0xff] %v1124
      %1133 = vst [vmem:[%s170 + $0x28] sm:$0xff] %v1125
      %1134 = vst [vmem:[%s170 + $0x30] sm:$0xff] %v1126
      %1135 = vst [vmem:[%s170 + $0x38] sm:$0xff] %v1127
      %p1136 = scmp.lt.s32.totalorder %s14, 1
      %s1137 = scalar_select %p1136, %s14, 1
      %s1138 = smul.addr %s1137, 8
      %s1139 = smul.addr %s1138, 8
      %s1140 = scalar_lea.vmem %s3, %s1139
      // Predicated region
      $region33: #{upconv.1} parent=31 // pred_check
        %p1141 = pneg %p100
      $region34: #{upconv.1} parent=31 // pred_check_branch
        %1143 = sbr.rel (%p1141) target = $region36
      $region35: #{upconv.1} parent=31 // pred_region
        _
      $region36: #{upconv.1} parent=31 // pred_fallthru
        _
    $region32: #{upconv.1} parent=5 // pred_fallthru
      _
    %p1144 = scmp.le.s32.totalorder 2, %s9
    // Predicated region
    $region37: #{upconv.1} parent=5 // pred_check
      %p1145 = pneg %p1144
    $region38: #{upconv.1} parent=5 // pred_check_branch
      %1147 = sbr.rel (%p1145) target = $region40
    $region39: #{upconv.1} parent=5 // pred_region
      %s1148 = ssub.s32 %s9, 2
      // Predicated region
      $region41: #{upconv.1} parent=39 // pred_check
        %p1149 = pneg %p106
      $region42: #{upconv.1} parent=39 // pred_check_branch
        %1151 = sbr.rel (%p1149) target = $region44
      $region43: #{upconv.1} parent=39 // pred_region
        %p1152 = scmp.lt.s32.totalorder %s15, 1
        %s1153 = scalar_select %p1152, %s15, 1
        %s1154 = smul.addr %s1153, 8
        %s1155 = smul.addr %s1154, 8
        %s1156 = scalar_lea.vmem %s3, %s1155
      $region44: #{upconv.1} parent=39 // pred_fallthru
        _
    $region40: #{upconv.1} parent=5 // pred_fallthru
      _
  $region6: #{upconv.1} parent=0 // loop_footer
    %s13 = sadd.s32 1, %s9
  $region7: #{upconv.1} parent=0 // loop_footer_branch
    %8 = sbr.rel target = $region3
  $region8: #{upconv.1} parent=0 // loop_exit
    _

</llo_original>
